<compile_context>
chip_gen: v5e
topology: v5e:2x2
jax: 0.10.0
libtpu: 0.0.40
codegen_flags: <defaults>
</compile_context>

<pallas_src>
import functools

import jax
import jax.numpy as jnp
from jax.experimental import pallas as pl
from jax.experimental.pallas import tpu as pltpu  # noqa: F401  (kept for TPU-specific knobs)


def _quan_alpha_kernel(alpha_ref, out_ref, *, bits):
    a = alpha_ref[...]                                   # (1, C) f32 block in VMEM
    # --- reduction: max over the whole alpha row, kept as a (1,1) vreg ---
    m = jnp.max(a, keepdims=True)                        # (1, 1)
    # --- q_code / scale on the (1,1) vreg (EUP log2/exp2, no scalar extract) ---
    q_code = jnp.float32(bits) - jnp.ceil(jnp.log2(m) + jnp.float32(1.0 - 1e-5))
    scale = jnp.exp2(q_code)                             # (1, 1), broadcasts below
    lo = jnp.float32(-(2.0 ** (bits - 1)))
    hi = jnp.float32(2.0 ** (bits - 1) - 1)              # note: not exactly representable
    #                                                      in f32 for bits=32 (matches
    #                                                      the f32 torch/jax reference)
    # --- elementwise quantize (VPU): round -> clamp -> divide by scale ---
    # Divide (not multiply by exp2(-q_code)) to exactly match the reference,
    # including the scale-overflow corner (q_code > 127 -> result 0).
    q = jnp.clip(jnp.round(a * scale), lo, hi) / scale
    out_ref[...] = q.astype(out_ref.dtype)


def quan_fn_alpha_pallas(alpha, bits=32):
    """Forward pass of quan_fn_alpha as a single-block Pallas TPU kernel.

    alpha: f32 array of strictly positive per-channel scales (any shape; the
    module uses a 1-D (C,) vector).
    """
    alpha = jnp.asarray(alpha, jnp.float32)
    orig_shape = alpha.shape
    a2d = alpha.reshape(1, -1)                           # free metadata reshape: (1, C)
    C = a2d.shape[1]

    out = pl.pallas_call(
        functools.partial(_quan_alpha_kernel, bits=bits),
        out_shape=jax.ShapeDtypeStruct(a2d.shape, jnp.float32),
        # No grid: whole (1, C) row is a single full-array VMEM block
        # (full-array block_shape is exempt from the (8,128) rule).
        in_specs=[pl.BlockSpec(a2d.shape, lambda: (0, 0))],
        out_specs=pl.BlockSpec(a2d.shape, lambda: (0, 0)),
        # Advisory hint: this custom call is tiny — don't serialize neighbors on it.
        cost_estimate=pl.CostEstimate(
            flops=3 * C, transcendentals=2, bytes_accessed=8 * C),
    )(a2d)

    return out.reshape(orig_shape)


def quan_fn_alpha_ref(alpha, bits=32):
    """Pure-JAX reference mirroring the PyTorch forward."""
    alpha = jnp.asarray(alpha, jnp.float32)
    q_code = bits - jnp.ceil(jnp.log2(jnp.max(alpha)) + 1 - 1e-5)
    scale = 2.0 ** q_code
    return jnp.clip(jnp.round(alpha * scale),
                    -(2.0 ** (bits - 1)), 2.0 ** (bits - 1) - 1) / scale


if __name__ == "__main__":
    key = jax.random.PRNGKey(0)
    keys = jax.random.split(key, 3)

    ok = True
    # Small channel counts consistent with the module: C=4 (tiny layer),
    # C=64 (small conv layer), C=300 (non-multiple of 128).  alpha must be
    # strictly positive (learned LLSQ scale).
    for C, kk in ((4, keys[0]), (64, keys[1]), (300, keys[2])):
        alpha = jax.random.uniform(kk, (C,), dtype=jnp.float32,
                                   minval=0.01, maxval=2.0)
        for bits in (8, 32):  # module default bit=32; 8-bit exercises real clamping
            out = jax.block_until_ready(quan_fn_alpha_pallas(alpha, bits=bits))
            ref = quan_fn_alpha_ref(alpha, bits=bits)
            if not jnp.allclose(out, ref, rtol=1e-6, atol=1e-6):
                ok = False
                print(f"MISMATCH at C={C}, bits={bits}: max err "
                      f"{float(jnp.max(jnp.abs(out - ref)))}")

    if ok:
        print("KERNEL_OK")
</pallas_src>

<mosaic_0001>
module attributes {stable_mosaic.version = 11 : i64} {
  func.func @_quan_alpha_kernel(%arg0: memref<1x4xf32, #tpu.memory_space<vmem>>, %arg1: memref<1x4xf32, #tpu.memory_space<vmem>>) attributes {dimension_semantics = [], scalar_prefetch = 0 : i64, scratch_operands = 0 : i64, tpu.core_type = #tpu.core_type<tc>} {
    %c0 = arith.constant 0 : index
    %c0_0 = arith.constant 0 : index
    %0 = vector.load %arg0[%c0, %c0_0] : memref<1x4xf32, #tpu.memory_space<vmem>>, vector<1x4xf32>
    %1 = vector.shape_cast %0 : vector<1x4xf32> to vector<1x1x4xf32>
    %cst = arith.constant dense<0xFF800000> : vector<1xf32>
    %2 = vector.multi_reduction <maximumf>, %1, %cst [1, 2] : vector<1x1x4xf32> to vector<1xf32>
    %3 = vector.shape_cast %2 : vector<1xf32> to vector<1x1x1xf32>
    %4 = vector.extract %3[0, 0, 0] : f32 from vector<1x1x1xf32>
    %5 = vector.broadcast %4 : f32 to vector<1x1xf32>
    %6 = math.log %5 : vector<1x1xf32>
    %cst_1 = arith.constant 2.000000e+00 : f32
    %7 = math.log %cst_1 : f32
    %8 = vector.broadcast %7 : f32 to vector<1x1xf32>
    %9 = arith.divf %6, %8 : vector<1x1xf32>
    %cst_2 = arith.constant 0.999989986 : f32
    %10 = vector.broadcast %cst_2 : f32 to vector<1x1xf32>
    %11 = arith.addf %9, %10 : vector<1x1xf32>
    %12 = math.ceil %11 : vector<1x1xf32>
    %cst_3 = arith.constant 8.000000e+00 : f32
    %13 = vector.broadcast %cst_3 : f32 to vector<1x1xf32>
    %14 = arith.subf %13, %12 : vector<1x1xf32>
    %15 = math.exp2 %14 : vector<1x1xf32>
    %16 = vector.broadcast %15 : vector<1x1xf32> to vector<1x4xf32>
    %17 = arith.mulf %0, %16 : vector<1x4xf32>
    %18 = math.roundeven %17 : vector<1x4xf32>
    %cst_4 = arith.constant -1.280000e+02 : f32
    %cst_5 = arith.constant 1.270000e+02 : f32
    %19 = vector.broadcast %cst_4 : f32 to vector<1x4xf32>
    %20 = arith.maximumf %19, %18 : vector<1x4xf32>
    %21 = vector.broadcast %cst_5 : f32 to vector<1x4xf32>
    %22 = arith.minimumf %21, %20 : vector<1x4xf32>
    %23 = vector.broadcast %15 : vector<1x1xf32> to vector<1x4xf32>
    %24 = arith.divf %22, %23 : vector<1x4xf32>
    %c0_6 = arith.constant 0 : index
    %c0_7 = arith.constant 0 : index
    %25 = vector.load %arg1[%c0_6, %c0_7] : memref<1x4xf32, #tpu.memory_space<vmem>>, vector<1x4xf32>
    tpu.vector_store %arg1[%c0_6, %c0_7], %24 {strides = array<i32>} : memref<1x4xf32, #tpu.memory_space<vmem>>, vector<1x4xf32>,
    return
  }
}

</mosaic_0001>

<llo_original>
// kernel: tpu_custom_call.1
$region0: #{tpu_custom_call.1}
  #allocation0 [shape = 'u32[]', space=smem, size = 0x4, offset = 0x4, fixed_abs, tag = 'smem constant byte address 0x4 - core index']
  #allocation1 [shape = 'u32[72,128]{1,0:T(1,128)}', space=vmem, size = 0x9000, scoped, tag = 'internal scratch']
  %s0 = inlined_call_operand.hbm [shape: f32[1,4], index: 0, kind: input, shape index: {}]
  %s1 = inlined_call_operand.hbm [shape: f32[1,4], index: 1, kind: output, shape index: {}]
  %s2 = sld [smem:[#allocation0]]
  $region18: #{tpu_custom_call.1} parent=0
    _
  %s4 = ssub.s32 1, %s2
  %s5 = scalar_select 0, %s4, %s2
  $region1: #{tpu_custom_call.1} parent=0
    #allocation2 [shape = 'u8[512]{0}', space=vmem, size = 0x400, scoped, tag = 'input window, operand 0, single buffered']
    #allocation3 [shape = 's32[1]{0}', space=sflag, size = 0x4, scoped, tag = 'scoped memory for tpu_custom_call.1']
    #allocation4 [shape = 's32[1]{0}', space=sflag, size = 0x4, scoped, tag = 'scoped memory for tpu_custom_call.1']
    #allocation5 [shape = 'u8[512]{0}', space=vmem, size = 0x400, scoped, tag = 'output window, operand 0, single buffered']
    %6 = vsyncpa [#allocation3], 0
    %7 = vsyncpa [#allocation4], 0
    // Predicated region
    $region2: #{tpu_custom_call.1} parent=1 // pred_check
      _
    $region3: #{tpu_custom_call.1} parent=1 // pred_check_branch
      %9 = sbr.rel (0) target = $region5
    $region4: #{tpu_custom_call.1} parent=1 // pred_region
      %11 = vsyncadd [#allocation3], 0
      %s13 = sshll.u32 %s0, 4
      %s14 = int_to_ptr.hbm [resolvable:$true] %s13
      %s15 = sshll.u32 [#allocation2], 4
      %s16 = int_to_ptr.vmem [resolvable:$true] %s15
      %18 = dma.hbm_to_vmem [thread:$0]  %s14, 16, %s16, [#allocation3]
    $region5: #{tpu_custom_call.1} parent=1 // pred_fallthru
      _
    // Predicated region
    $region6: #{tpu_custom_call.1} parent=1 // pred_check
      _
    $region7: #{tpu_custom_call.1} parent=1 // pred_check_branch
      %20 = sbr.rel (0) target = $region9
    $region8: #{tpu_custom_call.1} parent=1 // pred_region
      %22 = dma.done [#allocation3], 16
    $region9: #{tpu_custom_call.1} parent=1 // pred_fallthru
      _
    %v23 = vld [vmem:[#allocation2] sm:$0x1]
    %vm24 = vcmask 24576
    %v25 = vsel %vm24, %v23, -inf
    %26 = vmax.xlane.f32.xlu0 %v25
    %v27 = vpop.xlane.xlu0 %26
    %v28 = vrot.slane %v27, 4
    %v29 = vmax.f32 %v27, %v28
    %v30 = vrot.slane %v29, 2
    %v31 = vmax.f32 %v29, %v30
    %v32 = vrot.slane %v31, 1
    %v33 = vmax.f32 %v31, %v32
    %s34 = vtos %v33
    %v35 = vstv %s34
    %v36 = vlog2.pop %v35
    %v37 = vmul.f32 %v36, 0.6931472
    %v38 = vrcp.pop 0.6931472
    %v39 = vmul.f32 0.6931472, %v38
    %v40 = vsub.f32 1.0, %v39
    %v41 = vmul.f32 %v38, %v40
    %v42 = vadd.f32 %v38, %v41
    %vm43 = vweird.f32 %v38
    %v44 = vsel %vm43, %v38, %v42
    %v45 = vmul.f32 %v37, %v44
    %v46 = vadd.f32 %v45, 0.99999
    %v47 = vceil.f32 %v46
    %v48 = vsub.f32 8.0, %v47
    %v49 = vpow.pop %v48
    %v50 = vmul.f32 %v23, %v49
    %v51 = vround.ne.pseudo %v50
    %v52 = vmax.f32 %v51, -128.0
    %v53 = vmin.f32 %v52, 127.0
    %v54 = vrcp.pop %v49
    %v55 = vmul.f32 %v49, %v54
    %v56 = vsub.f32 1.0, %v55
    %v57 = vmul.f32 %v54, %v56
    %v58 = vadd.f32 %v54, %v57
    %vm59 = vweird.f32 %v49
    %vm60 = vweird.f32 %v54
    %vm61 = vmor %vm59, %vm60
    %v62 = vsel %vm61, %v54, %v58
    %v63 = vand.u32 2147483647, %v49
    %vm64 = vcmp.eq.f32.partialorder %v63, 8.507059e+37
    %v65 = vand.u32 %v49, 2147483648
    %v66 = vor.u32 1.1754944e-38, %v65
    %v67 = vsel %vm64, %v66, %v62
    %v68 = vmul.f32 %v53, %v67
    %69 = vst.msk [vmem:[#allocation5] sm:$0x1] %vm24, %v68
    // Predicated region
    $region10: #{tpu_custom_call.1} parent=1 // pred_check
      _
    $region11: #{tpu_custom_call.1} parent=1 // pred_check_branch
      %71 = sbr.rel (0) target = $region13
    $region12: #{tpu_custom_call.1} parent=1 // pred_region
      %73 = vsyncadd [#allocation4], 0
      %s75 = sshll.u32 [#allocation5], 4
      %s76 = int_to_ptr.vmem [resolvable:$true] %s75
      %s77 = sshll.u32 %s1, 4
      %s78 = int_to_ptr.hbm [resolvable:$true] %s77
      %80 = dma.vmem_to_hbm [thread:$0]  %s76, 16, %s78, [#allocation4]
    $region13: #{tpu_custom_call.1} parent=1 // pred_fallthru
      _
    // Predicated region
    $region14: #{tpu_custom_call.1} parent=1 // pred_check
      _
    $region15: #{tpu_custom_call.1} parent=1 // pred_check_branch
      %82 = sbr.rel (0) target = $region17
    $region16: #{tpu_custom_call.1} parent=1 // pred_region
      %84 = dma.done [#allocation4], 16
    $region17: #{tpu_custom_call.1} parent=1 // pred_fallthru
      _
    %85 = vsyncpa [#allocation3], 1
    %86 = vsyncpa [#allocation4], 1

</llo_original>
